<compile_context>
chip_gen: v7x
topology: tpu7x:2x2x1
jax: 0.10.0
libtpu: 0.0.40
codegen_flags: <defaults>
</compile_context>

<pallas_src>
import functools
import math

import jax
import jax.numpy as jnp
from jax.experimental import pallas as pl
from jax.experimental.pallas import tpu as pltpu

# ------------------------- fixed module "parameters" -------------------------
# Scharr gradient kernel (gradient_kernel(scharr_kernel())) as separable weights.
_SCHARR_W3 = 3.0 / 16.0
_SCHARR_W10 = 10.0 / 16.0

# RGB -> L (of LMN) weights of ColorConv('RGB', 'LMN'); only L feeds ssi().
_LMN_L = (0.06, 0.63, 0.27)

# sRGB -> XYZ matrix + D65 white point for rgb_to_xyz / xyz_to_lab.
_RGB_TO_XYZ = [[0.412453, 0.357580, 0.180423],
               [0.212671, 0.715160, 0.072169],
               [0.019334, 0.119193, 0.950227]]
_XYZ_WHITE = (0.950456, 1.0, 1.088754)

# SSI / SDSP hyper-parameters (defaults from the PyTorch module).
_SIGMA_C = 1e-3
_SIGMA_D = 145.0
_OMEGA_0 = 0.021
_SIGMA_F = 1.34
_C1 = 1.27
_C2 = 386.0 / 255.0 ** 2
_ALPHA = 0.4

# Set False for an exact-division fallback if bit-tight comparison against the
# PyTorch reference is required (approx reciprocal is ~1e-4 relative error).
_APPROX_RECIP = True


# ------------------------------- JAX glue ------------------------------------
def rgb_to_xyz(x, value_range=1.0):
    w = jnp.asarray(_RGB_TO_XYZ, jnp.float32)
    return jnp.einsum('ij,njhw->nihw', w, x / value_range)


def xyz_to_lab(x):
    white = jnp.asarray(_XYZ_WHITE, jnp.float32).reshape(1, 3, 1, 1)
    x = x / white
    eps = 6.0 / 29.0
    f = jnp.where(x > eps ** 3, jnp.cbrt(x), x / (3.0 * eps ** 2) + 4.0 / 29.0)
    l = 116.0 * f[:, 1] - 16.0
    a = 500.0 * (f[:, 0] - f[:, 1])
    b = 200.0 * (f[:, 1] - f[:, 2])
    return jnp.stack([l, a, b], axis=1)


def sdsp_filter(h, w, omega_0=_OMEGA_0, sigma_f=_SIGMA_F):
    """log-Gabor filter on the quadrant-shifted frequency grid (piqa filter_grid/log_gabor)."""
    u = (jnp.arange(h, dtype=jnp.float32) - h // 2) / (h - h % 2)
    v = (jnp.arange(w, dtype=jnp.float32) - w // 2) / (w - w % 2)
    uu, vv = jnp.meshgrid(u, v, indexing='ij')
    uu = jnp.fft.ifftshift(uu)
    vv = jnp.fft.ifftshift(vv)
    r = jnp.sqrt(uu ** 2 + vv ** 2)
    lg = jnp.exp(-jnp.log(jnp.where(r > 0, r / omega_0, 1.0)) ** 2
                 / (2.0 * math.log(sigma_f) ** 2))
    lg = jnp.where(r > 0, lg, 0.0)      # exp(-inf) = 0 at the DC term, as in torch
    return lg * (r <= 0.5)


def sdsp_prior(h, w, sigma_d=_SIGMA_D):
    """Gaussian centre prior s_d (identical for every image).

    Note: the torch code broadcasts the H-axis offsets along the last dim and the
    W-axis offsets along the first dim (swapped); correct only because H == W.
    """
    a = jnp.arange(h, dtype=jnp.float32) - (h - 1) / 2.0
    b = jnp.arange(w, dtype=jnp.float32) - (w - 1) / 2.0
    return jnp.exp(-(a[None, :] ** 2 + b[:, None] ** 2) / sigma_d ** 2)


def _prepare_side(img, filtr, s_d, value_range):
    """Per-side XLA prep: SDSP saliency map vs and squared Scharr gradient g2."""
    n, _, h, w = img.shape

    # ---- SDSP saliency (vs = s_f * s_c * s_d) -------------------------------
    lab = xyz_to_lab(rgb_to_xyz(img, value_range))
    f = jnp.real(jnp.fft.ifft2(jnp.fft.fft2(lab) * filtr)).astype(jnp.float32)
    s_f = jnp.sqrt(jnp.sum(f * f, axis=1))                         # (N, H, W)

    ab = lab[:, 1:].astype(jnp.float32)                            # (N, 2, H, W)
    flat = ab.reshape(n, 2, -1)
    lo = jnp.min(flat, axis=-1)[:, :, None, None]
    up = jnp.max(flat, axis=-1)[:, :, None, None]
    span = jnp.where(up > lo, up - lo, 1.0)
    abn = (ab - lo) / span
    s_c = 1.0 - jnp.exp(-jnp.sum(abn * abn, axis=1) / _SIGMA_C ** 2)

    vs = s_f * s_c * s_d[None]                                     # (N, H, W)

    # ---- squared Scharr gradient magnitude of the LMN luminance -------------
    lum = (_LMN_L[0] * img[:, 0] + _LMN_L[1] * img[:, 1]
           + _LMN_L[2] * img[:, 2]).astype(jnp.float32)
    lp = jnp.pad(lum, ((0, 0), (1, 1), (1, 1)))
    # Separable 3x3 Scharr cross-correlation (zero padding = conv2d padding=1).
    s_row = (_SCHARR_W3 * lp[:, 0:h, :] + _SCHARR_W10 * lp[:, 1:h + 1, :]
             + _SCHARR_W3 * lp[:, 2:h + 2, :])                     # (N, H, W+2)
    t_col = (_SCHARR_W3 * lp[:, :, 0:w] + _SCHARR_W10 * lp[:, :, 1:w + 1]
             + _SCHARR_W3 * lp[:, :, 2:w + 2])                     # (N, H+2, W)
    gh = s_row[:, :, 2:w + 2] - s_row[:, :, 0:w]
    gv = t_col[:, 2:h + 2, :] - t_col[:, 0:h, :]
    g2 = gh * gh + gv * gv                                         # (N, H, W)
    return vs, g2


# ----------------------------- Pallas kernel ----------------------------------
def _ssi_kernel(planes_ref, num_ref, den_ref, *, value_range, approx_recip):
    """SSI similarity + weighted reduction for a tile of image pairs.

    planes_ref block: (4, B_TILE, PR, 128) = [vs_x, vs_y, g2_x, g2_y], lane-dense.
    Zero-padded lanes / padded batch rows contribute 0 to both num and den.
    """
    c2 = _C2 * value_range ** 2

    vs_x = planes_ref[0]          # (B_TILE, PR, 128)
    vs_y = planes_ref[1]
    g2_x = planes_ref[2]
    g2_y = planes_ref[3]

    def ratio(p, q):
        if approx_recip:
            return p * pl.reciprocal(q, approx=True)
        return p / q

    vs_m = jnp.maximum(vs_x, vs_y)
    s_vs = ratio(2.0 * vs_x * vs_y + _C1, vs_x * vs_x + vs_y * vs_y + _C1)
    g_xy = jnp.sqrt(g2_x * g2_y)                       # g_x * g_y with ONE sqrt
    s_g = ratio(2.0 * g_xy + c2, g2_x + g2_y + c2)
    s = s_vs * jnp.exp(_ALPHA * jnp.log(s_g))          # s_g ** alpha (s_g > 0 since c2 > 0)

    weighted = s * vs_m
    num_ref[...] = jnp.sum(jnp.sum(weighted, axis=2, keepdims=True),
                           axis=1, keepdims=True)
    den_ref[...] = jnp.sum(jnp.sum(vs_m, axis=2, keepdims=True),
                           axis=1, keepdims=True)


# ------------------------------- wrappers --------------------------------------
def _ssi_pallas(vs_x, g2_x, vs_y, g2_y, value_range):
    n, h, w = vs_x.shape
    p = h * w
    p_pad = ((p + 127) // 128) * 128
    pr = p_pad // 128

    def pack(a):
        a = a.reshape(n, p)
        if p_pad != p:
            a = jnp.pad(a, ((0, 0), (0, p_pad - p)))
        return a.reshape(n, pr, 128)

    # One lane-dense input stream: (4, N, PR, 128).
    planes = jnp.stack([pack(vs_x), pack(vs_y), pack(g2_x), pack(g2_y)], axis=0)

    # ---- VMEM budget & batch tiling ------------------------------------------
    try:
        vmem_capacity = int(pltpu.get_tpu_info().vmem_capacity_bytes)
    except Exception:
        vmem_capacity = 64 * 1024 * 1024          # conservative (v7x per-TC)
    vmem_limit = min(int(0.5 * vmem_capacity), 100 * 1024 * 1024)

    per_pair_bytes = 4 * pr * 128 * 4             # 4 f32 planes per image pair
    # 2x double-buffered input block + ~3 pair-plane sets of in-kernel temporaries.
    b_tile = max(1, int(0.8 * vmem_limit) // (5 * per_pair_bytes))
    if n >= 2:
        # Keep >= 2 grid steps so both v7x TensorCores get work on the parallel axis.
        b_tile = min(b_tile, pl.cdiv(n, 2))
    b_tile = min(b_tile, n)
    steps = pl.cdiv(n, b_tile)
    n_pad = steps * b_tile
    if n_pad != n:
        planes = jnp.pad(planes, ((0, 0), (0, n_pad - n), (0, 0), (0, 0)))

    kernel = functools.partial(_ssi_kernel, value_range=value_range,
                               approx_recip=_APPROX_RECIP)
    num, den = pl.pallas_call(
        kernel,
        out_shape=(jax.ShapeDtypeStruct((n_pad, 1, 1), jnp.float32),
                   jax.ShapeDtypeStruct((n_pad, 1, 1), jnp.float32)),
        grid=(steps,),
        in_specs=[
            pl.BlockSpec((4, b_tile, pr, 128), lambda i: (0, i, 0, 0)),
        ],
        out_specs=(pl.BlockSpec((b_tile, 1, 1), lambda i: (i, 0, 0)),
                   pl.BlockSpec((b_tile, 1, 1), lambda i: (i, 0, 0))),
        compiler_params=pltpu.CompilerParams(
            dimension_semantics=("parallel",),
            vmem_limit_bytes=vmem_limit),
    )(planes)

    # Final divide in XLA *after* dropping padded batch rows (avoids 0/0 NaN).
    return num[:n, 0, 0] / den[:n, 0, 0]


@functools.partial(jax.jit, static_argnames=("value_range", "reduction"))
def ssi_forward(x, y, value_range=1.0, reduction="mean"):
    """Equivalent of SSI.forward(input, target)."""
    _, _, h, w = x.shape
    assert h == w, "sdsp's s_d term broadcasts only for square images (as in piqa)"
    m = round(min(h, w) / 256)
    if m > 1:
        # TODO(synk): avg_pool2d(kernel_size=M, ceil_mode=True) downsampling path
        # not implemented; test shapes keep M <= 1 so it is never taken.
        raise NotImplementedError("downsampling path (M > 1) not implemented")

    filtr = sdsp_filter(h, w)
    s_d = sdsp_prior(h, w)
    vs_x, g2_x = _prepare_side(x, filtr, s_d, value_range)
    vs_y, g2_y = _prepare_side(y, filtr, s_d, value_range)
    l = _ssi_pallas(vs_x, g2_x, vs_y, g2_y, value_range)

    if reduction == "mean":
        return jnp.mean(l)
    if reduction == "sum":
        return jnp.sum(l)
    return l


if __name__ == "__main__":
    key = jax.random.PRNGKey(0)
    kx, ky = jax.random.split(key)
    x = jax.random.uniform(kx, (2, 3, 16, 16), dtype=jnp.float32)
    y = jax.random.uniform(ky, (2, 3, 16, 16), dtype=jnp.float32)
    out = ssi_forward(x, y)
    jax.block_until_ready(out)
    print("KERNEL_OK")
</pallas_src>

<mosaic_0001>
module attributes {stable_mosaic.version = 11 : i64} {
  func.func @_ssi_kernel(%arg0: i32, %arg1: memref<4x1x2x128xf32, #tpu.memory_space<vmem>>, %arg2: memref<1x1x1xf32, #tpu.memory_space<vmem>>, %arg3: memref<1x1x1xf32, #tpu.memory_space<vmem>>) attributes {dimension_semantics = [#tpu.dimension_semantics<parallel>], iteration_bounds = array<i64: 2>, scalar_prefetch = 0 : i64, scratch_operands = 0 : i64, tpu.core_type = #tpu.core_type<tc>, window_params = [{transform_indices = @transform_0, window_bounds = array<i64: 4, 1, 2, 128>}, {transform_indices = @transform_1, window_bounds = array<i64: 1, 1, 1>}, {transform_indices = @transform_2, window_bounds = array<i64: 1, 1, 1>}]} {
    %c0 = arith.constant 0 : index
    %c0_0 = arith.constant 0 : index
    %c0_1 = arith.constant 0 : index
    %c0_2 = arith.constant 0 : index
    %0 = vector.load %arg1[%c0, %c0_0, %c0_1, %c0_2] : memref<4x1x2x128xf32, #tpu.memory_space<vmem>>, vector<1x1x2x128xf32>
    %1 = vector.shape_cast %0 : vector<1x1x2x128xf32> to vector<1x2x128xf32>
    %c1 = arith.constant 1 : index
    %c0_3 = arith.constant 0 : index
    %c0_4 = arith.constant 0 : index
    %c0_5 = arith.constant 0 : index
    %2 = vector.load %arg1[%c1, %c0_3, %c0_4, %c0_5] : memref<4x1x2x128xf32, #tpu.memory_space<vmem>>, vector<1x1x2x128xf32>
    %3 = vector.shape_cast %2 : vector<1x1x2x128xf32> to vector<1x2x128xf32>
    %c2 = arith.constant 2 : index
    %c0_6 = arith.constant 0 : index
    %c0_7 = arith.constant 0 : index
    %c0_8 = arith.constant 0 : index
    %4 = vector.load %arg1[%c2, %c0_6, %c0_7, %c0_8] : memref<4x1x2x128xf32, #tpu.memory_space<vmem>>, vector<1x1x2x128xf32>
    %5 = vector.shape_cast %4 : vector<1x1x2x128xf32> to vector<1x2x128xf32>
    %c3 = arith.constant 3 : index
    %c0_9 = arith.constant 0 : index
    %c0_10 = arith.constant 0 : index
    %c0_11 = arith.constant 0 : index
    %6 = vector.load %arg1[%c3, %c0_9, %c0_10, %c0_11] : memref<4x1x2x128xf32, #tpu.memory_space<vmem>>, vector<1x1x2x128xf32>
    %7 = vector.shape_cast %6 : vector<1x1x2x128xf32> to vector<1x2x128xf32>
    %8 = arith.maximumf %1, %3 : vector<1x2x128xf32>
    %cst = arith.constant 2.000000e+00 : f32
    %9 = vector.broadcast %cst : f32 to vector<1x2x128xf32>
    %10 = arith.mulf %9, %1 : vector<1x2x128xf32>
    %11 = arith.mulf %10, %3 : vector<1x2x128xf32>
    %cst_12 = arith.constant 1.270000e+00 : f32
    %12 = vector.broadcast %cst_12 : f32 to vector<1x2x128xf32>
    %13 = arith.addf %11, %12 : vector<1x2x128xf32>
    %14 = arith.mulf %1, %1 : vector<1x2x128xf32>
    %15 = arith.mulf %3, %3 : vector<1x2x128xf32>
    %16 = arith.addf %14, %15 : vector<1x2x128xf32>
    %cst_13 = arith.constant 1.270000e+00 : f32
    %17 = vector.broadcast %cst_13 : f32 to vector<1x2x128xf32>
    %18 = arith.addf %16, %17 : vector<1x2x128xf32>
    %19 = tpu.reciprocal %18 {approx = true} : vector<1x2x128xf32> -> vector<1x2x128xf32>
    %20 = arith.mulf %13, %19 : vector<1x2x128xf32>
    %21 = arith.mulf %5, %7 : vector<1x2x128xf32>
    %22 = math.sqrt %21 : vector<1x2x128xf32>
    %cst_14 = arith.constant 2.000000e+00 : f32
    %23 = vector.broadcast %cst_14 : f32 to vector<1x2x128xf32>
    %24 = arith.mulf %23, %22 : vector<1x2x128xf32>
    %cst_15 = arith.constant 0.00593617838 : f32
    %25 = vector.broadcast %cst_15 : f32 to vector<1x2x128xf32>
    %26 = arith.addf %24, %25 : vector<1x2x128xf32>
    %27 = arith.addf %5, %7 : vector<1x2x128xf32>
    %cst_16 = arith.constant 0.00593617838 : f32
    %28 = vector.broadcast %cst_16 : f32 to vector<1x2x128xf32>
    %29 = arith.addf %27, %28 : vector<1x2x128xf32>
    %30 = tpu.reciprocal %29 {approx = true} : vector<1x2x128xf32> -> vector<1x2x128xf32>
    %31 = arith.mulf %26, %30 : vector<1x2x128xf32>
    %32 = math.log %31 : vector<1x2x128xf32>
    %cst_17 = arith.constant 4.000000e-01 : f32
    %33 = vector.broadcast %cst_17 : f32 to vector<1x2x128xf32>
    %34 = arith.mulf %33, %32 : vector<1x2x128xf32>
    %35 = math.exp %34 : vector<1x2x128xf32>
    %36 = arith.mulf %20, %35 : vector<1x2x128xf32>
    %37 = arith.mulf %36, %8 : vector<1x2x128xf32>
    %cst_18 = arith.constant dense<0.000000e+00> : vector<1x2xf32>
    %38 = vector.multi_reduction <add>, %37, %cst_18 [2] : vector<1x2x128xf32> to vector<1x2xf32>
    %39 = vector.shape_cast %38 : vector<1x2xf32> to vector<1x2x1xf32>
    %cst_19 = arith.constant dense<0.000000e+00> : vector<1x1xf32>
    %40 = vector.multi_reduction <add>, %39, %cst_19 [1] : vector<1x2x1xf32> to vector<1x1xf32>
    %41 = vector.shape_cast %40 : vector<1x1xf32> to vector<1x1x1xf32>
    %c0_20 = arith.constant 0 : index
    %c0_21 = arith.constant 0 : index
    %c0_22 = arith.constant 0 : index
    %42 = vector.load %arg2[%c0_20, %c0_21, %c0_22] : memref<1x1x1xf32, #tpu.memory_space<vmem>>, vector<1x1x1xf32>
    tpu.vector_store %arg2[%c0_20, %c0_21, %c0_22], %41 {strides = array<i32>} : memref<1x1x1xf32, #tpu.memory_space<vmem>>, vector<1x1x1xf32>,
    %cst_23 = arith.constant dense<0.000000e+00> : vector<1x2xf32>
    %43 = vector.multi_reduction <add>, %8, %cst_23 [2] : vector<1x2x128xf32> to vector<1x2xf32>
    %44 = vector.shape_cast %43 : vector<1x2xf32> to vector<1x2x1xf32>
    %cst_24 = arith.constant dense<0.000000e+00> : vector<1x1xf32>
    %45 = vector.multi_reduction <add>, %44, %cst_24 [1] : vector<1x2x1xf32> to vector<1x1xf32>
    %46 = vector.shape_cast %45 : vector<1x1xf32> to vector<1x1x1xf32>
    %c0_25 = arith.constant 0 : index
    %c0_26 = arith.constant 0 : index
    %c0_27 = arith.constant 0 : index
    %47 = vector.load %arg3[%c0_25, %c0_26, %c0_27] : memref<1x1x1xf32, #tpu.memory_space<vmem>>, vector<1x1x1xf32>
    tpu.vector_store %arg3[%c0_25, %c0_26, %c0_27], %46 {strides = array<i32>} : memref<1x1x1xf32, #tpu.memory_space<vmem>>, vector<1x1x1xf32>,
    return
  }
  func.func @transform_0(%arg0: i32) -> (i32, i32, i32, i32) {
    %c0_i32 = arith.constant 0 : i32
    %c0_i32_0 = arith.constant 0 : i32
    %c0_i32_1 = arith.constant 0 : i32
    %c0_i32_2 = arith.constant 0 : i32
    return %c0_i32, %arg0, %c0_i32_0, %c0_i32_1 : i32, i32, i32, i32
  }
  func.func @transform_1(%arg0: i32) -> (i32, i32, i32) {
    %c0_i32 = arith.constant 0 : i32
    %c0_i32_0 = arith.constant 0 : i32
    %c0_i32_1 = arith.constant 0 : i32
    return %arg0, %c0_i32, %c0_i32_0 : i32, i32, i32
  }
  func.func @transform_2(%arg0: i32) -> (i32, i32, i32) {
    %c0_i32 = arith.constant 0 : i32
    %c0_i32_0 = arith.constant 0 : i32
    %c0_i32_1 = arith.constant 0 : i32
    return %arg0, %c0_i32, %c0_i32_0 : i32, i32, i32
  }
}

</mosaic_0001>

<llo_original>
// kernel: ssi_forward.1
$region0: #{ssi_forward.1}
  #allocation0 [shape = 'u32[]', space=smem, size = 0x4, offset = 0x4, fixed_abs, tag = 'smem constant byte address 0x4 - core index']
  #allocation1 [shape = 'u32[144,128]{1,0:T(1,128)}', space=vmem, size = 0x12000, scoped, tag = 'internal scratch']
  %s0 = inlined_call_operand.vmem [shape: f32[4,2,2,128], index: 0, kind: input, shape index: {}]
  %s1 = inlined_call_operand.vmem [shape: f32[2,1,1], index: 1, kind: output, shape index: {0}]
  %s2 = inlined_call_operand.vmem [shape: f32[2,1,1], index: 2, kind: output, shape index: {1}]
  %3 = xla_tuple %s1, %s2
  %s4 = sld [smem:[#allocation0]]
  $region86: #{ssi_forward.1} parent=0
    _
  %s6 = ssub.s32 1, %s4
  %s7 = scalar_select 0, %s6, %s4
  $region1: #{ssi_forward.1} parent=0
    #allocation2 [shape = 'u8[8192]{0}', space=vmem, size = 0x2000, scoped, tag = 'input window, operand 0']
    loop: start=0, step=1, limit=4
    $region2: #{ssi_forward.1} parent=1 // loop_pre_header
      _
    $region3: #{ssi_forward.1} parent=1 // loop_header
      %s9 = sphi 0, %s13
      %p10 = scmp.ge.s32.totalorder %s9, 4
      %s19 = sphi 0, %s21
      %s22 = sphi 0, %s19
      %s23 = sphi 0, %s22
      %s39 = sphi 0, %s23
      %s45 = sphi 0, %s47
      %s48 = sphi 0, %s45
      %s49 = sphi 0, %s48
      %s65 = sphi 0, %s49
      %s71 = sphi 0, %s73
      %s74 = sphi 0, %s71
      %s75 = sphi 0, %s74
      %s91 = sphi 0, %s75
    $region4: #{ssi_forward.1} parent=1 // loop_header_branch
      %12 = sbr.rel (%p10) target = $region8
    $region5: #{ssi_forward.1} parent=1 // loop_body
      %s14 = ssub.s32 %s9, 1
      %s15 = ssub.s32 %s9, 2
      %s16 = sadd.s32 %s9, 1
      %s17 = ssub.s32 %s9, %s16
      %p18 = scmp.eq.s32.totalorder %s17, 0
      %s20 = sadd.s32 %s19, 1
      %s21 = scalar_select %p18, %s19, %s20
      %p24 = pneg %p18
      %p25 = scmp.eq.s32.totalorder %s9, 1
      %p26 = por %p24, %p25
      %p27 = scmp.ne.s32.totalorder %s19, %s22
      %p28 = scmp.eq.s32.totalorder %s9, 0
      %p29 = por %p27, %p28
      %p30 = scmp.ne.s32.totalorder %s19, %s22
      %p31 = scmp.eq.s32.totalorder %s14, 1
      %p32 = por %p30, %p31
      %p33 = scmp.ne.s32.totalorder %s22, %s23
      %p34 = scmp.eq.s32.totalorder %s14, 0
      %p35 = por %p33, %p34
      %p36 = scmp.ne.s32.totalorder %s22, %s23
      %p37 = scmp.eq.s32.totalorder %s15, 1
      %p38 = por %p36, %p37
      %p40 = scmp.ne.s32.totalorder %s23, %s39
      %p41 = scmp.eq.s32.totalorder %s15, 0
      %p42 = por %p40, %p41
      %s43 = ssub.s32 %s9, %s16
      %p44 = scmp.eq.s32.totalorder %s43, 0
      %s46 = sadd.s32 %s45, 1
      %s47 = scalar_select %p44, %s45, %s46
      %p50 = pneg %p44
      %p51 = scmp.eq.s32.totalorder %s9, 1
      %p52 = por %p50, %p51
      %p53 = scmp.ne.s32.totalorder %s45, %s48
      %p54 = scmp.eq.s32.totalorder %s9, 0
      %p55 = por %p53, %p54
      %p56 = scmp.ne.s32.totalorder %s45, %s48
      %p57 = scmp.eq.s32.totalorder %s14, 1
      %p58 = por %p56, %p57
      %p59 = scmp.ne.s32.totalorder %s48, %s49
      %p60 = scmp.eq.s32.totalorder %s14, 0
      %p61 = por %p59, %p60
      %p62 = scmp.ne.s32.totalorder %s48, %s49
      %p63 = scmp.eq.s32.totalorder %s15, 1
      %p64 = por %p62, %p63
      %p66 = scmp.ne.s32.totalorder %s49, %s65
      %p67 = scmp.eq.s32.totalorder %s15, 0
      %p68 = por %p66, %p67
      %s69 = ssub.s32 %s9, %s16
      %p70 = scmp.eq.s32.totalorder %s69, 0
      %s72 = sadd.s32 %s71, 1
      %s73 = scalar_select %p70, %s71, %s72
      %p76 = pneg %p70
      %p77 = scmp.eq.s32.totalorder %s9, 1
      %p78 = por %p76, %p77
      %p79 = scmp.ne.s32.totalorder %s71, %s74
      %p80 = scmp.eq.s32.totalorder %s9, 0
      %p81 = por %p79, %p80
      %p82 = scmp.ne.s32.totalorder %s71, %s74
      %p83 = scmp.eq.s32.totalorder %s14, 1
      %p84 = por %p82, %p83
      %p85 = scmp.ne.s32.totalorder %s74, %s75
      %p86 = scmp.eq.s32.totalorder %s14, 0
      %p87 = por %p85, %p86
      %p88 = scmp.ne.s32.totalorder %s74, %s75
      %p89 = scmp.eq.s32.totalorder %s15, 1
      %p90 = por %p88, %p89
      %p92 = scmp.ne.s32.totalorder %s75, %s91
      %p93 = scmp.eq.s32.totalorder %s15, 0
      %p94 = por %p92, %p93
      %p95 = scmp.le.s32.totalorder 1, %s9
      %p96 = scmp.lt.s32.totalorder %s9, 3
      %p97 = pnand %p95, %p96
      %p98 = pneg %p97
      // Predicated region
      $region9: #{ssi_forward.1} parent=5 // pred_check
        _
      $region10: #{ssi_forward.1} parent=5 // pred_check_branch
        %100 = sbr.rel (%p97) target = $region12
      $region11: #{ssi_forward.1} parent=5 // pred_region
        %s101 = ssub.s32 %s9, 1
      $region12: #{ssi_forward.1} parent=5 // pred_fallthru
        _
      %p102 = scmp.lt.s32.totalorder %s9, 2
      // Predicated region
      $region13: #{ssi_forward.1} parent=5 // pred_check
        %p103 = pneg %p102
      $region14: #{ssi_forward.1} parent=5 // pred_check_branch
        %105 = sbr.rel (%p103) target = $region16
      $region15: #{ssi_forward.1} parent=5 // pred_region
        // Predicated region
        $region17: #{ssi_forward.1} parent=15 // pred_check
          %p106 = pneg %p29
        $region18: #{ssi_forward.1} parent=15 // pred_check_branch
          %108 = sbr.rel (%p106) target = $region20
        $region19: #{ssi_forward.1} parent=15 // pred_region
          %s109 = sand.u32 %s19, 1
          %s110 = sand.u32 %s19, 1
          %s111 = smul.addr %s110, 8
          %s112 = scalar_lea.vmem [#allocation2], %s111
          %s113 = smul.addr %s9, 2
          %s114 = scalar_lea.vmem %s0, %s113
          // Predicated region
          $region21: #{ssi_forward.1} parent=19 // pred_check
            _
          $region22: #{ssi_forward.1} parent=19 // pred_check_branch
            %116 = sbr.rel (0) target = $region24
          $region23: #{ssi_forward.1} parent=19 // pred_region
            // Predicated region
            $region25: #{ssi_forward.1} parent=23 // pred_check
              _
            $region26: #{ssi_forward.1} parent=23 // pred_check_branch
              %118 = sbr.rel target = $region28
            $region27: #{ssi_forward.1} parent=23 // pred_region
              // Predicated region
              $region40: #{ssi_forward.1} parent=27 // pred_check
                _
              $region41: #{ssi_forward.1} parent=27 // pred_check_branch
                %139 = sbr.rel (0) target = $region43
              $region42: #{ssi_forward.1} parent=27 // pred_region
                loop: start=0, step=1, limit=1
                $region44: #{ssi_forward.1} parent=42 // loop_pre_header
                  _
                $region45: #{ssi_forward.1} parent=42 // loop_header
                  %s141 = sphi 0, %s145
                  %p142 = scmp.ge.s32.totalorder %s141, 1
                  %s146 = sphi %s114, %s114
                  %s147 = sphi %s112, %s112
                $region46: #{ssi_forward.1} parent=42 // loop_header_branch
                  %144 = sbr.rel (%p142) target = $region50
                $region47: #{ssi_forward.1} parent=42 // loop_body
                  _
                $region48: #{ssi_forward.1} parent=42 // loop_footer
                  %s145 = sadd.s32 1, %s141
                $region49: #{ssi_forward.1} parent=42 // loop_footer_branch
                  %140 = sbr.rel target = $region45
                $region50: #{ssi_forward.1} parent=42 // loop_exit
                  _
                loop: start=0, step=1, limit=1
                $region51: #{ssi_forward.1} parent=42 // loop_pre_header
                  _
                $region52: #{ssi_forward.1} parent=42 // loop_header
                  %s150 = sphi 0, %s154
                  %p151 = scmp.ge.s32.totalorder %s150, 1
                  %s155 = sphi %s114, %s114
                  %s156 = sphi %s112, %s112
                $region53: #{ssi_forward.1} parent=42 // loop_header_branch
                  %153 = sbr.rel (%p151) target = $region57
                $region54: #{ssi_forward.1} parent=42 // loop_body
                  %v157 = vld [vmem:[%s155] sm:$0x3]
                  %158 = vst [vmem:[%s156] sm:$0x3] %v157
                  %v159 = vld [vmem:[%s155 + $0x4] sm:$0x3]
                  %160 = vst [vmem:[%s156 + $0x2] sm:$0x3] %v159
                  %v161 = vld [vmem:[%s155 + $0x8] sm:$0x3]
                  %162 = vst [vmem:[%s156 + $0x4] sm:$0x3] %v161
                  %v163 = vld [vmem:[%s155 + $0xc] sm:$0x3]
                  %164 = vst [vmem:[%s156 + $0x6] sm:$0x3] %v163
                $region55: #{ssi_forward.1} parent=42 // loop_footer
                  %s154 = sadd.s32 1, %s150
                $region56: #{ssi_forward.1} parent=42 // loop_footer_branch
                  %149 = sbr.rel target = $region52
                $region57: #{ssi_forward.1} parent=42 // loop_exit
                  _
              $region43: #{ssi_forward.1} parent=27 // pred_fallthru
                _
            $region28: #{ssi_forward.1} parent=23 // pred_fallthru
              _
            // Predicated region
            $region29: #{ssi_forward.1} parent=23 // pred_check
              _
            $region30: #{ssi_forward.1} parent=23 // pred_check_branch
              %120 = sbr.rel (0) target = $region32
            $region31: #{ssi_forward.1} parent=23 // pred_region
              loop: start=0, step=1, limit=1
              $region33: #{ssi_forward.1} parent=31 // loop_pre_header
                _
              $region34: #{ssi_forward.1} parent=31 // loop_header
                %s123 = sphi 0, %s127
                %p124 = scmp.ge.s32.totalorder %s123, 1
                %s128 = sphi %s114, %s114
                %s129 = sphi %s112, %s112
              $region35: #{ssi_forward.1} parent=31 // loop_header_branch
                %126 = sbr.rel (%p124) target = $region39
              $region36: #{ssi_forward.1} parent=31 // loop_body
                %v130 = vld [vmem:[%s128] sm:$0x3]
                %131 = vst [vmem:[%s129] sm:$0x3] %v130
                %v132 = vld [vmem:[%s128 + $0x4] sm:$0x3]
                %133 = vst [vmem:[%s129 + $0x2] sm:$0x3] %v132
                %v134 = vld [vmem:[%s128 + $0x8] sm:$0x3]
                %135 = vst [vmem:[%s129 + $0x4] sm:$0x3] %v134
                %v136 = vld [vmem:[%s128 + $0xc] sm:$0x3]
                %137 = vst [vmem:[%s129 + $0x6] sm:$0x3] %v136
              $region37: #{ssi_forward.1} parent=31 // loop_footer
                %s127 = sadd.s32 1, %s123
              $region38: #{ssi_forward.1} parent=31 // loop_footer_branch
                %122 = sbr.rel target = $region34
              $region39: #{ssi_forward.1} parent=31 // loop_exit
                _
            $region32: #{ssi_forward.1} parent=23 // pred_fallthru
              _
          $region24: #{ssi_forward.1} parent=19 // pred_fallthru
            _
          %165 = vnop
        $region20: #{ssi_forward.1} parent=15 // pred_fallthru
          _
      $region16: #{ssi_forward.1} parent=5 // pred_fallthru
        _
      %p166 = scmp.le.s32.totalorder 1, %s9
      %p167 = scmp.lt.s32.totalorder %s9, 3
      %p168 = pnand %p166, %p167
      %p169 = pneg %p168
      // Predicated region
      $region58: #{ssi_forward.1} parent=5 // pred_check
        _
      $region59: #{ssi_forward.1} parent=5 // pred_check_branch
        %171 = sbr.rel (%p168) target = $region61
      $region60: #{ssi_forward.1} parent=5 // pred_region
        %s172 = ssub.s32 %s9, 1
        %s173 = sand.u32 %s22, 1
        %s174 = sand.u32 %s22, 1
        %s175 = smul.addr %s174, 8
        %s176 = scalar_lea.vmem [#allocation2], %s175
        // Predicated region
        $region62: #{ssi_forward.1} parent=60 // pred_check
          %p177 = pneg %p35
        $region63: #{ssi_forward.1} parent=60 // pred_check_branch
          %179 = sbr.rel (%p177) target = $region65
        $region64: #{ssi_forward.1} parent=60 // pred_region
          _
        $region65: #{ssi_forward.1} parent=60 // pred_fallthru
          _
        %s180 = sand.u32 %s22, 1
        %s181 = sand.u32 %s22, 1
        %s182 = smul.addr %s181, 8
        %s183 = scalar_lea.vmem [#allocation2], %s182
        %p184 = pneg %p35
        %p185 = pneg %p32
        %p186 = pneg %p61
        %p187 = pneg %p58
        %p188 = scmp.lt.s32.totalorder %s14, 1
        %s189 = scalar_select %p188, %s14, 1
        %s190 = scalar_lea.vmem %s1, %s189
        %p191 = pneg %p87
        %p192 = pneg %p84
        %p193 = scmp.lt.s32.totalorder %s14, 1
        %s194 = scalar_select %p193, %s14, 1
        %s195 = scalar_lea.vmem %s2, %s194
        %p196 = scmp.lt.s32.totalorder %s14, 1
        %s197 = scalar_select %p196, %s14, 1
        %s198 = scalar_lea.vmem %s1, %s197
        %p199 = scmp.lt.s32.totalorder %s14, 1
        %s200 = scalar_select %p199, %s14, 1
        %s201 = scalar_lea.vmem %s2, %s200
        %v202 = vld [vmem:[%s176] sm:$0x3]
        %s203 = scalar_lea.vmem %s176, 2 [#allocation2]
        %v204 = vld [vmem:[%s203] sm:$0x3]
        %s205 = scalar_lea.vmem %s176, 4 [#allocation2]
        %v206 = vld [vmem:[%s205] sm:$0x3]
        %s207 = scalar_lea.vmem %s176, 6 [#allocation2]
        %v208 = vld [vmem:[%s207] sm:$0x3]
        %v209 = vmax.f32 %v202, %v204
        %v210 = vmul.f32 %v202, 2.0
        %v211 = vmul.f32 %v210, %v204
        %v212 = vadd.f32 %v211, 1.27
        %v213 = vmul.f32 %v202, %v202
        %v214 = vmul.f32 %v204, %v204
        %v215 = vadd.f32 %v213, %v214
        %v216 = vadd.f32 %v215, 1.27
        %v217 = vrcp.pop %v216
        %v218 = vmul.f32 %v212, %v217
        %v219 = vmul.f32 %v206, %v208
        %v220 = vrsqrt.pop %v219
        %v221 = vmul.f32 %v219, %v220
        %vm222 = vcmp.eq.f32.partialorder %v219, inf
        %v223 = vsel %vm222, %v219, %v221
        %vm224 = vcmp.eq.f32.partialorder %v219, 0.0
        %v225 = vand.u32 %v219, 2147483648
        %v226 = vsel %vm224, %v225, %v223
        %v227 = vmul.f32 %v226, 2.0
        %v228 = vadd.f32 %v227, 0.0059361784
        %v229 = vadd.f32 %v206, %v208
        %v230 = vadd.f32 %v229, 0.0059361784
        %v231 = vrcp.pop %v230
        %v232 = vmul.f32 %v228, %v231
        %v233 = vlog2.pop %v232
        %v234 = vmul.f32 %v233, 0.6931472
        %v235 = vmul.f32 %v234, 0.4
        %v236 = vmul.f32 %v235, 1.442695
        %v237 = vpow.pop %v236
        %v238 = vmul.f32 %v218, %v237
        %v239 = vmul.f32 %v238, %v209
        %vm240 = vcmask 1041408
        %v241 = vsel %vm240, %v239, 0.0
        %242 = vadd.xlane.f32.xlu0 %v241
        %v243 = vpop.xlane.xlu0 %242
        %v244 = vsel %vm240, %v243, 0.0
        %v245 = vrot.slane %v244, 4
        %v246 = vadd.f32 %v244, %v245
        %v247 = vrot.slane %v246, 2
        %v248 = vadd.f32 %v246, %v247
        %v249 = vrot.slane %v248, 1
        %v250 = vadd.f32 %v248, %v249
        %vm251 = vcmask 0
        %252 = vst.msk [vmem:[%s198] sm:$0x1] %vm251, %v250
        %v253 = vsel %vm240, %v209, 0.0
        %254 = vadd.xlane.f32.xlu0 %v253
        %v255 = vpop.xlane.xlu0 %254
        %v256 = vsel %vm240, %v255, 0.0
        %v257 = vrot.slane %v256, 4
        %v258 = vadd.f32 %v256, %v257
        %v259 = vrot.slane %v258, 2
        %v260 = vadd.f32 %v258, %v259
        %v261 = vrot.slane %v260, 1
        %v262 = vadd.f32 %v260, %v261
        %263 = vst.msk [vmem:[%s201] sm:$0x1] %vm251, %v262
        %p264 = scmp.lt.s32.totalorder %s14, 1
        %s265 = scalar_select %p264, %s14, 1
        %s266 = scalar_lea.vmem %s1, %s265
        %p267 = scmp.lt.s32.totalorder %s14, 1
        %s268 = scalar_select %p267, %s14, 1
        %s269 = scalar_lea.vmem %s2, %s268
        // Predicated region
        $region66: #{ssi_forward.1} parent=60 // pred_check
          %p270 = pneg %p58
        $region67: #{ssi_forward.1} parent=60 // pred_check_branch
          %272 = sbr.rel (%p270) target = $region69
        $region68: #{ssi_forward.1} parent=60 // pred_region
          _
        $region69: #{ssi_forward.1} parent=60 // pred_fallthru
          _
        // Predicated region
        $region70: #{ssi_forward.1} parent=60 // pred_check
          %p273 = pneg %p84
        $region71: #{ssi_forward.1} parent=60 // pred_check_branch
          %275 = sbr.rel (%p273) target = $region73
        $region72: #{ssi_forward.1} parent=60 // pred_region
          _
        $region73: #{ssi_forward.1} parent=60 // pred_fallthru
          _
      $region61: #{ssi_forward.1} parent=5 // pred_fallthru
        _
      %p276 = scmp.le.s32.totalorder 2, %s9
      // Predicated region
      $region74: #{ssi_forward.1} parent=5 // pred_check
        %p277 = pneg %p276
      $region75: #{ssi_forward.1} parent=5 // pred_check_branch
        %279 = sbr.rel (%p277) target = $region77
      $region76: #{ssi_forward.1} parent=5 // pred_region
        %s280 = ssub.s32 %s9, 2
        // Predicated region
        $region78: #{ssi_forward.1} parent=76 // pred_check
          %p281 = pneg %p64
        $region79: #{ssi_forward.1} parent=76 // pred_check_branch
          %283 = sbr.rel (%p281) target = $region81
        $region80: #{ssi_forward.1} parent=76 // pred_region
          %p284 = scmp.lt.s32.totalorder %s15, 1
          %s285 = scalar_select %p284, %s15, 1
          %s286 = scalar_lea.vmem %s1, %s285
        $region81: #{ssi_forward.1} parent=76 // pred_fallthru
          _
        // Predicated region
        $region82: #{ssi_forward.1} parent=76 // pred_check
          %p287 = pneg %p90
        $region83: #{ssi_forward.1} parent=76 // pred_check_branch
          %289 = sbr.rel (%p287) target = $region85
        $region84: #{ssi_forward.1} parent=76 // pred_region
          %p290 = scmp.lt.s32.totalorder %s15, 1
          %s291 = scalar_select %p290, %s15, 1
          %s292 = scalar_lea.vmem %s2, %s291
        $region85: #{ssi_forward.1} parent=76 // pred_fallthru
          _
      $region77: #{ssi_forward.1} parent=5 // pred_fallthru
        _
    $region6: #{ssi_forward.1} parent=1 // loop_footer
      %s13 = sadd.s32 1, %s9
    $region7: #{ssi_forward.1} parent=1 // loop_footer_branch
      %8 = sbr.rel target = $region3
    $region8: #{ssi_forward.1} parent=1 // loop_exit
      _

</llo_original>
